<compile_context>
chip_gen: v6e
topology: v6e:2x2x1
jax: 0.10.0
libtpu: 0.0.40
codegen_flags: <defaults>
</compile_context>

<pallas_src>
import functools

import jax
import jax.numpy as jnp
from jax import lax
from jax.experimental import pallas as pl
from jax.experimental.pallas import tpu as pltpu


_OUT_LANES = 128          # one lane-dense f32 row per batch tile


def _consistency_kernel(probs_ref, out_ref, *, inv_temperature, int_power,
                        n_valid_rows, tile_rows):
    """One batch tile -> scalar sum over its rows of sum_c (sharp - avg)**2."""
    num_views, _, num_classes = probs_ref.shape

    # Mean over views, accumulated in f32 (accepts bf16 inputs; never
    # materializes an f32 copy of the whole (V, TN, C) block).
    acc = probs_ref[0].astype(jnp.float32)                       # (TN, C)
    for v in range(1, num_views):
        acc = acc + probs_ref[v].astype(jnp.float32)
    avg = acc * (1.0 / num_views)                                # (TN, C)

    # Rows past the true batch size (partial last tile): replace them with the
    # uniform distribution so log / renormalization stay finite; their
    # contribution is zeroed at the end.
    row = (lax.broadcasted_iota(jnp.int32, (tile_rows, 1), 0)
           + pl.program_id(0) * tile_rows)                       # (TN, 1)
    valid = row < n_valid_rows
    avg = jnp.where(valid, avg, 1.0 / num_classes)

    if int_power is not None:
        # 1/T is a small integer (e.g. T = 0.5 -> square): pure VPU multiplies,
        # no EUP log/exp, no underflow concerns (avg <= 1).
        sharp = avg
        for _ in range(int_power - 1):
            sharp = sharp * avg
    else:
        # avg ** (1/T) = exp(log(avg)/T); subtract the per-row max of log(avg)
        # before the exp so the class-sum cannot underflow to 0 (the common
        # scale cancels in the renormalization below).
        log_avg = jnp.log(avg)
        log_avg = log_avg - jnp.max(log_avg, axis=-1, keepdims=True)
        sharp = jnp.exp(log_avg * inv_temperature)

    denom = jnp.sum(sharp, axis=-1, keepdims=True)               # (TN, 1)
    sharp = sharp * pl.reciprocal(denom, approx=False)

    diff = sharp - avg
    per_row = jnp.sum(diff * diff, axis=-1, keepdims=True)       # (TN, 1)
    per_row = jnp.where(valid, per_row, 0.0)

    # Per-tile partial sum, broadcast across one lane-dense (1, 128) row:
    # unmasked vst + a tiny contiguous writeback DMA per grid step.
    tile_sum = jnp.sum(per_row)
    out_ref[...] = jnp.full((1, _OUT_LANES), tile_sum, dtype=jnp.float32)


def _round_up(x, m):
    return ((x + m - 1) // m) * m


def _choose_tile_rows(num_views, n, c, itemsize):
    """Rows per batch tile, sized for the HBM-bandwidth roofline, not VMEM."""
    c_pad = _round_up(c, 128)                # lane padding as laid out in VMEM
    pack = max(8, 32 // itemsize)            # sublane packing: 8 f32 / 16 bf16 / 32 fp8
    # Combined per-row VMEM cost: double-buffered input block + ~6 f32
    # temporaries (avg / sharp / log / diff / ...).  An ~8 MiB budget puts tn
    # in the measured 512-2048-row sweet spot; bigger tiles buy no bandwidth.
    per_row_bytes = 2 * num_views * c_pad * itemsize + 6 * c_pad * 4
    tn = (8 * 1024 * 1024) // max(per_row_bytes, 1)
    # Keep >= ~8 batch tiles when N allows so the "parallel" grid axis actually
    # shards across v7x's two TensorCores (v5e/v6e have one TC -> harmless).
    tn = min(tn, 2048, max(pack, n // 8))
    tn = max(pack, (tn // pack) * pack)
    if tn >= n:
        tn = n                               # single tile: block dim == full dim
    return tn


def consistency_loss(probs, temperature, tile_rows=None):
    """Consistency loss.  probs: (V, N, C) probabilities, f32 or bf16.

    Prefer feeding bf16 probs: the kernel is HBM-read-bound (reads V*N*C,
    writes ~nothing), so halving the input bytes is ~2x wall-clock on every
    TPU generation; the view-mean and all downstream math accumulate in f32
    inside the kernel regardless.
    """
    num_views, n, c = probs.shape
    # temperature is a static hyperparameter (module __init__ arg), baked in
    # at trace time -- matches the PyTorch module's contract.
    inv_t = 1.0 / float(temperature)
    rounded = round(inv_t)
    int_power = int(rounded) if (abs(inv_t - rounded) < 1e-6
                                 and 1 <= rounded <= 8) else None

    tn = int(tile_rows) if tile_rows is not None else _choose_tile_rows(
        num_views, n, c, probs.dtype.itemsize)
    num_tiles = pl.cdiv(n, tn)

    kernel = functools.partial(
        _consistency_kernel,
        inv_temperature=inv_t,
        int_power=int_power,
        n_valid_rows=n,
        tile_rows=tn,
    )

    # Advisory cost estimate so XLA can overlap this bandwidth-bound call with
    # neighboring ops in the surrounding step.
    flops = (num_views + 8) * n * c
    transcendentals = 0 if int_power is not None else 2 * n * c
    bytes_accessed = (num_views * n * c * probs.dtype.itemsize
                      + num_tiles * _OUT_LANES * 4)

    partial_sums = pl.pallas_call(
        kernel,
        out_shape=jax.ShapeDtypeStruct((1, num_tiles * _OUT_LANES), jnp.float32),
        grid_spec=pltpu.PrefetchScalarGridSpec(
            num_scalar_prefetch=0,
            grid=(num_tiles,),
            # NOTE: if an xprof trace ever shows the per-view strided DMA
            # exposed at these ~2 MiB blocks, add pipeline_mode=pl.Buffered(3).
            in_specs=[pl.BlockSpec((num_views, tn, c), lambda i: (0, i, 0))],
            out_specs=pl.BlockSpec((1, _OUT_LANES), lambda i: (0, i)),
        ),
        compiler_params=pltpu.CompilerParams(
            dimension_semantics=("parallel",),
            # Flat 32 MiB: above v5e's 16 MiB scoped default, comfortably under
            # v7x's 64 MiB-per-TensorCore physical VMEM.
            vmem_limit_bytes=32 * 1024 * 1024,
        ),
        cost_estimate=pl.CostEstimate(
            flops=flops,
            transcendentals=transcendentals,
            bytes_accessed=bytes_accessed),
    )(probs)

    # Each tile's partial sum is replicated across its 128-lane slab; take lane
    # 0 of each tile and finish the (tiny) batch mean in plain JAX.
    per_tile = partial_sums.reshape(num_tiles, _OUT_LANES)[:, 0]
    return jnp.sum(per_tile) * (1.0 / n)


def _reference(probs, temperature):
    avg = jnp.mean(probs.astype(jnp.float32), axis=0)
    sharp = avg ** (1.0 / temperature)
    sharp = sharp / jnp.sum(sharp, axis=-1, keepdims=True)
    return jnp.mean(jnp.sum((sharp - avg) ** 2, axis=-1))


if __name__ == "__main__":
    key = jax.random.PRNGKey(0)
    num_views, batch, num_classes = 4, 320, 32

    logits = jax.random.normal(key, (num_views, batch, num_classes), jnp.float32)
    probs = jax.nn.softmax(logits, axis=-1)

    # 1) Integer-power path (T = 0.5 -> square) and log/exp path (T = 0.7),
    #    auto-tiled multi-tile "parallel" grid.
    for temperature in (0.5, 0.7):
        loss = jax.block_until_ready(consistency_loss(probs, temperature))
        ref = jax.block_until_ready(_reference(probs, temperature))
        assert jnp.allclose(loss, ref, atol=1e-5, rtol=1e-5), (temperature, loss, ref)

    # 2) bf16 input (halves HBM traffic; kernel accumulates in f32).
    probs_bf16 = probs.astype(jnp.bfloat16)
    loss_bf = jax.block_until_ready(consistency_loss(probs_bf16, 0.5))
    ref_bf = jax.block_until_ready(_reference(probs_bf16, 0.5))
    assert jnp.allclose(loss_bf, ref_bf, atol=1e-5, rtol=1e-4), (loss_bf, ref_bf)

    # 3) Forced tile_rows=128: 3 tiles with a partial (masked) last tile.
    loss_p = jax.block_until_ready(consistency_loss(probs, 0.5, tile_rows=128))
    ref_p = jax.block_until_ready(_reference(probs, 0.5))
    assert jnp.allclose(loss_p, ref_p, atol=1e-5, rtol=1e-5), (loss_p, ref_p)

    # 4) Tiny batch (single tile: block dims == full dims).
    key2 = jax.random.PRNGKey(2)
    logits2 = jax.random.normal(key2, (num_views, 8, num_classes), jnp.float32)
    probs2 = jax.nn.softmax(logits2, axis=-1)
    loss2 = jax.block_until_ready(consistency_loss(probs2, 0.7))
    ref2 = jax.block_until_ready(_reference(probs2, 0.7))
    assert jnp.allclose(loss2, ref2, atol=1e-5, rtol=1e-5), (loss2, ref2)

    print("KERNEL_OK")
</pallas_src>

<mosaic_0001>
module attributes {stable_mosaic.version = 11 : i64} {
  func.func @_consistency_kernel(%arg0: i32, %arg1: memref<4x40x32xf32, #tpu.memory_space<vmem>>, %arg2: memref<1x128xf32, #tpu.memory_space<vmem>>) attributes {dimension_semantics = [#tpu.dimension_semantics<parallel>], iteration_bounds = array<i64: 8>, scalar_prefetch = 0 : i64, scratch_operands = 0 : i64, tpu.core_type = #tpu.core_type<tc>, window_params = [{transform_indices = @transform_0, window_bounds = array<i64: 4, 40, 32>}, {transform_indices = @transform_1, window_bounds = array<i64: 1, 128>}]} {
    %c0 = arith.constant 0 : index
    %c0_0 = arith.constant 0 : index
    %c0_1 = arith.constant 0 : index
    %0 = vector.load %arg1[%c0, %c0_0, %c0_1] : memref<4x40x32xf32, #tpu.memory_space<vmem>>, vector<1x40x32xf32>
    %1 = vector.shape_cast %0 : vector<1x40x32xf32> to vector<40x32xf32>
    %c1 = arith.constant 1 : index
    %c0_2 = arith.constant 0 : index
    %c0_3 = arith.constant 0 : index
    %2 = vector.load %arg1[%c1, %c0_2, %c0_3] : memref<4x40x32xf32, #tpu.memory_space<vmem>>, vector<1x40x32xf32>
    %3 = vector.shape_cast %2 : vector<1x40x32xf32> to vector<40x32xf32>
    %4 = arith.addf %1, %3 : vector<40x32xf32>
    %c2 = arith.constant 2 : index
    %c0_4 = arith.constant 0 : index
    %c0_5 = arith.constant 0 : index
    %5 = vector.load %arg1[%c2, %c0_4, %c0_5] : memref<4x40x32xf32, #tpu.memory_space<vmem>>, vector<1x40x32xf32>
    %6 = vector.shape_cast %5 : vector<1x40x32xf32> to vector<40x32xf32>
    %7 = arith.addf %4, %6 : vector<40x32xf32>
    %c3 = arith.constant 3 : index
    %c0_6 = arith.constant 0 : index
    %c0_7 = arith.constant 0 : index
    %8 = vector.load %arg1[%c3, %c0_6, %c0_7] : memref<4x40x32xf32, #tpu.memory_space<vmem>>, vector<1x40x32xf32>
    %9 = vector.shape_cast %8 : vector<1x40x32xf32> to vector<40x32xf32>
    %10 = arith.addf %7, %9 : vector<40x32xf32>
    %cst = arith.constant 2.500000e-01 : f32
    %11 = vector.broadcast %cst : f32 to vector<40x32xf32>
    %12 = arith.mulf %10, %11 : vector<40x32xf32>
    %13 = tpu.iota {dimensions = array<i32: 0>} : vector<40x1xi32>
    %c40_i32 = arith.constant 40 : i32
    %14 = arith.muli %arg0, %c40_i32 : i32
    %15 = vector.broadcast %14 : i32 to vector<40x1xi32>
    %16 = arith.addi %13, %15 : vector<40x1xi32>
    %c320_i32 = arith.constant 320 : i32
    %17 = vector.broadcast %c320_i32 : i32 to vector<40x1xi32>
    %18 = arith.cmpi slt, %16, %17 : vector<40x1xi32>
    %cst_8 = arith.constant 3.125000e-02 : f32
    %19 = vector.shape_cast %18 : vector<40x1xi1> to vector<40x1xi1>
    %20 = vector.broadcast %19 : vector<40x1xi1> to vector<40x32xi1>
    %21 = vector.broadcast %cst_8 : f32 to vector<40x32xf32>
    %22 = arith.select %20, %12, %21 : vector<40x32xi1>, vector<40x32xf32>
    %23 = arith.mulf %22, %22 : vector<40x32xf32>
    %cst_9 = arith.constant dense<0.000000e+00> : vector<40xf32>
    %24 = vector.multi_reduction <add>, %23, %cst_9 [1] : vector<40x32xf32> to vector<40xf32>
    %25 = vector.shape_cast %24 : vector<40xf32> to vector<40x1xf32>
    %26 = tpu.reciprocal %25 : vector<40x1xf32> -> vector<40x1xf32>
    %27 = vector.broadcast %26 : vector<40x1xf32> to vector<40x32xf32>
    %28 = arith.mulf %23, %27 : vector<40x32xf32>
    %29 = arith.subf %28, %22 : vector<40x32xf32>
    %30 = arith.mulf %29, %29 : vector<40x32xf32>
    %cst_10 = arith.constant dense<0.000000e+00> : vector<40xf32>
    %31 = vector.multi_reduction <add>, %30, %cst_10 [1] : vector<40x32xf32> to vector<40xf32>
    %32 = vector.shape_cast %31 : vector<40xf32> to vector<40x1xf32>
    %cst_11 = arith.constant 0.000000e+00 : f32
    %33 = vector.broadcast %cst_11 : f32 to vector<40x1xf32>
    %34 = arith.select %18, %32, %33 : vector<40x1xi1>, vector<40x1xf32>
    %35 = vector.shape_cast %34 : vector<40x1xf32> to vector<1x40x1xf32>
    %cst_12 = arith.constant dense<0.000000e+00> : vector<1xf32>
    %36 = vector.multi_reduction <add>, %35, %cst_12 [1, 2] : vector<1x40x1xf32> to vector<1xf32>
    %37 = vector.shape_cast %36 : vector<1xf32> to vector<1x1x1xf32>
    %38 = vector.extract %37[0, 0, 0] : f32 from vector<1x1x1xf32>
    %39 = vector.broadcast %38 : f32 to vector<1x128xf32>
    %c0_13 = arith.constant 0 : index
    %c0_14 = arith.constant 0 : index
    %40 = vector.load %arg2[%c0_13, %c0_14] : memref<1x128xf32, #tpu.memory_space<vmem>>, vector<1x128xf32>
    tpu.vector_store %arg2[%c0_13, %c0_14], %39 {strides = array<i32>} : memref<1x128xf32, #tpu.memory_space<vmem>>, vector<1x128xf32>,
    return
  }
  func.func @transform_0(%arg0: i32) -> (i32, i32, i32) {
    %c0_i32 = arith.constant 0 : i32
    %c0_i32_0 = arith.constant 0 : i32
    %c0_i32_1 = arith.constant 0 : i32
    return %c0_i32, %arg0, %c0_i32_0 : i32, i32, i32
  }
  func.func @transform_1(%arg0: i32) -> (i32, i32) {
    %c0_i32 = arith.constant 0 : i32
    %c0_i32_0 = arith.constant 0 : i32
    return %c0_i32, %arg0 : i32, i32
  }
}

</mosaic_0001>

<llo_original>
// kernel: tpu_custom_call.1
$region0: #{tpu_custom_call.1}
  #allocation0 [shape = 'u32[]', space=smem, size = 0x4, offset = 0x4, fixed_abs, tag = 'smem constant byte address 0x4 - core index']
  #allocation1 [shape = 'u32[144,128]{1,0:T(1,128)}', space=vmem, size = 0x12000, scoped, tag = 'internal scratch']
  %s0 = inlined_call_operand.vmem [shape: f32[4,320,32], index: 0, kind: input, shape index: {}]
  %s1 = inlined_call_operand.hbm [shape: f32[1,1024], index: 1, kind: output, shape index: {}]
  %s2 = sld [smem:[#allocation0]]
  $region75: #{tpu_custom_call.1} parent=0
    _
  %s4 = ssub.s32 1, %s2
  %s5 = scalar_select 0, %s4, %s2
  $region1: #{tpu_custom_call.1} parent=0
    #allocation2 [shape = 'u8[163840]{0}', space=vmem, size = 0x28000, scoped, tag = 'input window, operand 0']
    #allocation3 [shape = 'u8[1024]{0}', space=vmem, size = 0x400, scoped, tag = 'output window, operand 0']
    #allocation4 [shape = 's32[2]{0}', space=sflag, size = 0x8, scoped, tag = 'scoped memory for tpu_custom_call.1']
    %6 = vsyncpa [#allocation4], 0
    %s7 = scalar_lea.sflag [#allocation4], 1
    %8 = vsyncpa %s7, 0
    loop: start=0, step=1, limit=10
    $region2: #{tpu_custom_call.1} parent=1 // loop_pre_header
      _
    $region3: #{tpu_custom_call.1} parent=1 // loop_header
      %s10 = sphi 0, %s14
      %p11 = scmp.ge.s32.totalorder %s10, 10
      %s20 = sphi 0, %s22
      %s23 = sphi 0, %s20
      %s24 = sphi 0, %s23
      %s40 = sphi 0, %s24
      %s46 = sphi 0, %s48
      %s49 = sphi 0, %s46
      %s50 = sphi 0, %s49
      %s66 = sphi 0, %s50
    $region4: #{tpu_custom_call.1} parent=1 // loop_header_branch
      %13 = sbr.rel (%p11) target = $region8
    $region5: #{tpu_custom_call.1} parent=1 // loop_body
      %s15 = ssub.s32 %s10, 1
      %s16 = ssub.s32 %s10, 2
      %s17 = sadd.s32 %s10, 1
      %s18 = ssub.s32 %s10, %s17
      %p19 = scmp.eq.s32.totalorder %s18, 0
      %s21 = sadd.s32 %s20, 1
      %s22 = scalar_select %p19, %s20, %s21
      %p25 = pneg %p19
      %p26 = scmp.eq.s32.totalorder %s10, 7
      %p27 = por %p25, %p26
      %p28 = scmp.ne.s32.totalorder %s20, %s23
      %p29 = scmp.eq.s32.totalorder %s10, 0
      %p30 = por %p28, %p29
      %p31 = scmp.ne.s32.totalorder %s20, %s23
      %p32 = scmp.eq.s32.totalorder %s15, 7
      %p33 = por %p31, %p32
      %p34 = scmp.ne.s32.totalorder %s23, %s24
      %p35 = scmp.eq.s32.totalorder %s15, 0
      %p36 = por %p34, %p35
      %p37 = scmp.ne.s32.totalorder %s23, %s24
      %p38 = scmp.eq.s32.totalorder %s16, 7
      %p39 = por %p37, %p38
      %p41 = scmp.ne.s32.totalorder %s24, %s40
      %p42 = scmp.eq.s32.totalorder %s16, 0
      %p43 = por %p41, %p42
      %s44 = ssub.s32 %s10, %s17
      %p45 = scmp.eq.s32.totalorder %s44, 0
      %s47 = sadd.s32 %s46, 1
      %s48 = scalar_select %p45, %s46, %s47
      %p51 = pneg %p45
      %p52 = scmp.eq.s32.totalorder %s10, 7
      %p53 = por %p51, %p52
      %p54 = scmp.ne.s32.totalorder %s46, %s49
      %p55 = scmp.eq.s32.totalorder %s10, 0
      %p56 = por %p54, %p55
      %p57 = scmp.ne.s32.totalorder %s46, %s49
      %p58 = scmp.eq.s32.totalorder %s15, 7
      %p59 = por %p57, %p58
      %p60 = scmp.ne.s32.totalorder %s49, %s50
      %p61 = scmp.eq.s32.totalorder %s15, 0
      %p62 = por %p60, %p61
      %p63 = scmp.ne.s32.totalorder %s49, %s50
      %p64 = scmp.eq.s32.totalorder %s16, 7
      %p65 = por %p63, %p64
      %p67 = scmp.ne.s32.totalorder %s50, %s66
      %p68 = scmp.eq.s32.totalorder %s16, 0
      %p69 = por %p67, %p68
      %p70 = scmp.le.s32.totalorder 1, %s10
      %p71 = scmp.lt.s32.totalorder %s10, 9
      %p72 = pnand %p70, %p71
      %p73 = pneg %p72
      // Predicated region
      $region9: #{tpu_custom_call.1} parent=5 // pred_check
        _
      $region10: #{tpu_custom_call.1} parent=5 // pred_check_branch
        %75 = sbr.rel (%p72) target = $region12
      $region11: #{tpu_custom_call.1} parent=5 // pred_region
        %s76 = ssub.s32 %s10, 1
      $region12: #{tpu_custom_call.1} parent=5 // pred_fallthru
        _
      %p77 = scmp.lt.s32.totalorder %s10, 8
      // Predicated region
      $region13: #{tpu_custom_call.1} parent=5 // pred_check
        %p78 = pneg %p77
      $region14: #{tpu_custom_call.1} parent=5 // pred_check_branch
        %80 = sbr.rel (%p78) target = $region16
      $region15: #{tpu_custom_call.1} parent=5 // pred_region
        // Predicated region
        $region17: #{tpu_custom_call.1} parent=15 // pred_check
          %p81 = pneg %p30
        $region18: #{tpu_custom_call.1} parent=15 // pred_check_branch
          %83 = sbr.rel (%p81) target = $region20
        $region19: #{tpu_custom_call.1} parent=15 // pred_region
          %s84 = sand.u32 %s20, 1
          %s85 = sand.u32 %s20, 1
          %s86 = smul.addr %s85, 160
          %s87 = scalar_lea.vmem [#allocation2], %s86
          %s88 = smul.u32 5, %s10
          %s89 = smul.addr %s88, 8
          %s90 = scalar_lea.vmem %s0, %s89
          // Predicated region
          $region21: #{tpu_custom_call.1} parent=19 // pred_check
            _
          $region22: #{tpu_custom_call.1} parent=19 // pred_check_branch
            %92 = sbr.rel (0) target = $region24
          $region23: #{tpu_custom_call.1} parent=19 // pred_region
            // Predicated region
            $region25: #{tpu_custom_call.1} parent=23 // pred_check
              _
            $region26: #{tpu_custom_call.1} parent=23 // pred_check_branch
              %94 = sbr.rel (0) target = $region28
            $region27: #{tpu_custom_call.1} parent=23 // pred_region
              // Predicated region
              $region40: #{tpu_custom_call.1} parent=27 // pred_check
                _
              $region41: #{tpu_custom_call.1} parent=27 // pred_check_branch
                %148 = sbr.rel (0) target = $region43
              $region42: #{tpu_custom_call.1} parent=27 // pred_region
                loop: start=0, step=1, limit=1
                $region44: #{tpu_custom_call.1} parent=42 // loop_pre_header
                  _
                $region45: #{tpu_custom_call.1} parent=42 // loop_header
                  %s150 = sphi 0, %s154
                  %p151 = scmp.ge.s32.totalorder %s150, 1
                  %s155 = sphi %s90, %s90
                  %s156 = sphi %s87, %s87
                $region46: #{tpu_custom_call.1} parent=42 // loop_header_branch
                  %153 = sbr.rel (%p151) target = $region50
                $region47: #{tpu_custom_call.1} parent=42 // loop_body
                  %v157 = vld [vmem:[%s155] sm:$0xff]
                  %158 = vst [vmem:[%s156] sm:$0xff] %v157
                  %v159 = vld [vmem:[%s155 + $0x8] sm:$0xff]
                  %160 = vst [vmem:[%s156 + $0x8] sm:$0xff] %v159
                  %v161 = vld [vmem:[%s155 + $0x10] sm:$0xff]
                  %162 = vst [vmem:[%s156 + $0x10] sm:$0xff] %v161
                  %v163 = vld [vmem:[%s155 + $0x18] sm:$0xff]
                  %164 = vst [vmem:[%s156 + $0x18] sm:$0xff] %v163
                  %v165 = vld [vmem:[%s155 + $0x20] sm:$0xff]
                  %166 = vst [vmem:[%s156 + $0x20] sm:$0xff] %v165
                  %v167 = vld [vmem:[%s155 + $0x140] sm:$0xff]
                  %168 = vst [vmem:[%s156 + $0x28] sm:$0xff] %v167
                  %v169 = vld [vmem:[%s155 + $0x148] sm:$0xff]
                  %170 = vst [vmem:[%s156 + $0x30] sm:$0xff] %v169
                  %v171 = vld [vmem:[%s155 + $0x150] sm:$0xff]
                  %172 = vst [vmem:[%s156 + $0x38] sm:$0xff] %v171
                  %v173 = vld [vmem:[%s155 + $0x158] sm:$0xff]
                  %174 = vst [vmem:[%s156 + $0x40] sm:$0xff] %v173
                  %v175 = vld [vmem:[%s155 + $0x160] sm:$0xff]
                  %176 = vst [vmem:[%s156 + $0x48] sm:$0xff] %v175
                  %v177 = vld [vmem:[%s155 + $0x280] sm:$0xff]
                  %178 = vst [vmem:[%s156 + $0x50] sm:$0xff] %v177
                  %v179 = vld [vmem:[%s155 + $0x288] sm:$0xff]
                  %180 = vst [vmem:[%s156 + $0x58] sm:$0xff] %v179
                  %v181 = vld [vmem:[%s155 + $0x290] sm:$0xff]
                  %182 = vst [vmem:[%s156 + $0x60] sm:$0xff] %v181
                  %v183 = vld [vmem:[%s155 + $0x298] sm:$0xff]
                  %184 = vst [vmem:[%s156 + $0x68] sm:$0xff] %v183
                  %v185 = vld [vmem:[%s155 + $0x2a0] sm:$0xff]
                  %186 = vst [vmem:[%s156 + $0x70] sm:$0xff] %v185
                  %v187 = vld [vmem:[%s155 + $0x3c0] sm:$0xff]
                  %188 = vst [vmem:[%s156 + $0x78] sm:$0xff] %v187
                  %v189 = vld [vmem:[%s155 + $0x3c8] sm:$0xff]
                  %190 = vst [vmem:[%s156 + $0x80] sm:$0xff] %v189
                  %v191 = vld [vmem:[%s155 + $0x3d0] sm:$0xff]
                  %192 = vst [vmem:[%s156 + $0x88] sm:$0xff] %v191
                  %v193 = vld [vmem:[%s155 + $0x3d8] sm:$0xff]
                  %194 = vst [vmem:[%s156 + $0x90] sm:$0xff] %v193
                  %v195 = vld [vmem:[%s155 + $0x3e0] sm:$0xff]
                  %196 = vst [vmem:[%s156 + $0x98] sm:$0xff] %v195
                $region48: #{tpu_custom_call.1} parent=42 // loop_footer
                  %s154 = sadd.s32 1, %s150
                $region49: #{tpu_custom_call.1} parent=42 // loop_footer_branch
                  %149 = sbr.rel target = $region45
                $region50: #{tpu_custom_call.1} parent=42 // loop_exit
                  _
              $region43: #{tpu_custom_call.1} parent=27 // pred_fallthru
                _
              // Predicated region
              $region51: #{tpu_custom_call.1} parent=27 // pred_check
                _
              $region52: #{tpu_custom_call.1} parent=27 // pred_check_branch
                %198 = sbr.rel target = $region54
              $region53: #{tpu_custom_call.1} parent=27 // pred_region
                _
              $region54: #{tpu_custom_call.1} parent=27 // pred_fallthru
                _
            $region28: #{tpu_custom_call.1} parent=23 // pred_fallthru
              _
            // Predicated region
            $region29: #{tpu_custom_call.1} parent=23 // pred_check
              _
            $region30: #{tpu_custom_call.1} parent=23 // pred_check_branch
              %96 = sbr.rel target = $region32
            $region31: #{tpu_custom_call.1} parent=23 // pred_region
              %s98 = ssub.s32 256, 1
              loop: start=0, step=1, limit=1
              $region33: #{tpu_custom_call.1} parent=31 // loop_pre_header
                _
              $region34: #{tpu_custom_call.1} parent=31 // loop_header
                %s100 = sphi 0, %s104
                %p101 = scmp.ge.s32.totalorder %s100, 1
                %s105 = sphi %s90, %s90
                %s106 = sphi %s87, %s87
              $region35: #{tpu_custom_call.1} parent=31 // loop_header_branch
                %103 = sbr.rel (%p101) target = $region39
              $region36: #{tpu_custom_call.1} parent=31 // loop_body
                %v107 = vld [vmem:[%s105] sm:%s98]
                %108 = vst [vmem:[%s106] sm:%s98] %v107
                %v109 = vld [vmem:[%s105 + $0x8] sm:%s98]
                %110 = vst [vmem:[%s106 + $0x8] sm:%s98] %v109
                %v111 = vld [vmem:[%s105 + $0x10] sm:%s98]
                %112 = vst [vmem:[%s106 + $0x10] sm:%s98] %v111
                %v113 = vld [vmem:[%s105 + $0x18] sm:%s98]
                %114 = vst [vmem:[%s106 + $0x18] sm:%s98] %v113
                %v115 = vld [vmem:[%s105 + $0x20] sm:%s98]
                %116 = vst [vmem:[%s106 + $0x20] sm:%s98] %v115
                %v117 = vld [vmem:[%s105 + $0x140] sm:%s98]
                %118 = vst [vmem:[%s106 + $0x28] sm:%s98] %v117
                %v119 = vld [vmem:[%s105 + $0x148] sm:%s98]
                %120 = vst [vmem:[%s106 + $0x30] sm:%s98] %v119
                %v121 = vld [vmem:[%s105 + $0x150] sm:%s98]
                %122 = vst [vmem:[%s106 + $0x38] sm:%s98] %v121
                %v123 = vld [vmem:[%s105 + $0x158] sm:%s98]
                %124 = vst [vmem:[%s106 + $0x40] sm:%s98] %v123
                %v125 = vld [vmem:[%s105 + $0x160] sm:%s98]
                %126 = vst [vmem:[%s106 + $0x48] sm:%s98] %v125
                %v127 = vld [vmem:[%s105 + $0x280] sm:%s98]
                %128 = vst [vmem:[%s106 + $0x50] sm:%s98] %v127
                %v129 = vld [vmem:[%s105 + $0x288] sm:%s98]
                %130 = vst [vmem:[%s106 + $0x58] sm:%s98] %v129
                %v131 = vld [vmem:[%s105 + $0x290] sm:%s98]
                %132 = vst [vmem:[%s106 + $0x60] sm:%s98] %v131
                %v133 = vld [vmem:[%s105 + $0x298] sm:%s98]
                %134 = vst [vmem:[%s106 + $0x68] sm:%s98] %v133
                %v135 = vld [vmem:[%s105 + $0x2a0] sm:%s98]
                %136 = vst [vmem:[%s106 + $0x70] sm:%s98] %v135
                %v137 = vld [vmem:[%s105 + $0x3c0] sm:%s98]
                %138 = vst [vmem:[%s106 + $0x78] sm:%s98] %v137
                %v139 = vld [vmem:[%s105 + $0x3c8] sm:%s98]
                %140 = vst [vmem:[%s106 + $0x80] sm:%s98] %v139
                %v141 = vld [vmem:[%s105 + $0x3d0] sm:%s98]
                %142 = vst [vmem:[%s106 + $0x88] sm:%s98] %v141
                %v143 = vld [vmem:[%s105 + $0x3d8] sm:%s98]
                %144 = vst [vmem:[%s106 + $0x90] sm:%s98] %v143
                %v145 = vld [vmem:[%s105 + $0x3e0] sm:%s98]
                %146 = vst [vmem:[%s106 + $0x98] sm:%s98] %v145
              $region37: #{tpu_custom_call.1} parent=31 // loop_footer
                %s104 = sadd.s32 1, %s100
              $region38: #{tpu_custom_call.1} parent=31 // loop_footer_branch
                %99 = sbr.rel target = $region34
              $region39: #{tpu_custom_call.1} parent=31 // loop_exit
                _
            $region32: #{tpu_custom_call.1} parent=23 // pred_fallthru
              _
          $region24: #{tpu_custom_call.1} parent=19 // pred_fallthru
            _
          %199 = vnop
        $region20: #{tpu_custom_call.1} parent=15 // pred_fallthru
          _
      $region16: #{tpu_custom_call.1} parent=5 // pred_fallthru
        _
      %p200 = scmp.le.s32.totalorder 1, %s10
      %p201 = scmp.lt.s32.totalorder %s10, 9
      %p202 = pnand %p200, %p201
      %p203 = pneg %p202
      // Predicated region
      $region55: #{tpu_custom_call.1} parent=5 // pred_check
        _
      $region56: #{tpu_custom_call.1} parent=5 // pred_check_branch
        %205 = sbr.rel (%p202) target = $region58
      $region57: #{tpu_custom_call.1} parent=5 // pred_region
        %s206 = ssub.s32 %s10, 1
        %s207 = sand.u32 %s23, 1
        %s208 = sand.u32 %s23, 1
        %s209 = smul.addr %s208, 160
        %s210 = scalar_lea.vmem [#allocation2], %s209
        // Predicated region
        $region59: #{tpu_custom_call.1} parent=57 // pred_check
          %p211 = pneg %p36
        $region60: #{tpu_custom_call.1} parent=57 // pred_check_branch
          %213 = sbr.rel (%p211) target = $region62
        $region61: #{tpu_custom_call.1} parent=57 // pred_region
          _
        $region62: #{tpu_custom_call.1} parent=57 // pred_fallthru
          _
        %s214 = sand.u32 %s23, 1
        %s215 = sand.u32 %s23, 1
        %s216 = smul.addr %s215, 160
        %s217 = scalar_lea.vmem [#allocation2], %s216
        %p218 = pneg %p36
        %p219 = pneg %p33
        %p220 = pneg %p62
        %p221 = pneg %p59
        %s222 = sand.u32 %s49, 1
        %s223 = scalar_lea.sflag [#allocation4], %s222
        %s224 = sand.u32 %s49, 1
        %s225 = scalar_lea.vmem [#allocation3], %s224
        %s226 = smul.u32 5, %s15
        %v227 = vld [vmem:[%s210] sm:$0xff]
        %v228 = vld [vmem:[%s210 + $0x8] sm:$0xff]
        %v229 = vld [vmem:[%s210 + $0x10] sm:$0xff]
        %v230 = vld [vmem:[%s210 + $0x18] sm:$0xff]
        %v231 = vld [vmem:[%s210 + $0x20] sm:$0xff]
        %s232 = scalar_lea.vmem %s210, 40 [#allocation2]
        %v233 = vld [vmem:[%s232] sm:$0xff]
        %v234 = vld [vmem:[%s232 + $0x8] sm:$0xff]
        %v235 = vld [vmem:[%s232 + $0x10] sm:$0xff]
        %v236 = vld [vmem:[%s232 + $0x18] sm:$0xff]
        %v237 = vld [vmem:[%s232 + $0x20] sm:$0xff]
        %v238 = vadd.f32 %v227, %v233
        %v239 = vadd.f32 %v228, %v234
        %v240 = vadd.f32 %v229, %v235
        %v241 = vadd.f32 %v230, %v236
        %v242 = vadd.f32 %v231, %v237
        %s243 = scalar_lea.vmem %s210, 80 [#allocation2]
        %v244 = vld [vmem:[%s243] sm:$0xff]
        %v245 = vld [vmem:[%s243 + $0x8] sm:$0xff]
        %v246 = vld [vmem:[%s243 + $0x10] sm:$0xff]
        %v247 = vld [vmem:[%s243 + $0x18] sm:$0xff]
        %v248 = vld [vmem:[%s243 + $0x20] sm:$0xff]
        %v249 = vadd.f32 %v238, %v244
        %v250 = vadd.f32 %v239, %v245
        %v251 = vadd.f32 %v240, %v246
        %v252 = vadd.f32 %v241, %v247
        %v253 = vadd.f32 %v242, %v248
        %s254 = scalar_lea.vmem %s210, 120 [#allocation2]
        %v255 = vld [vmem:[%s254] sm:$0xff]
        %v256 = vld [vmem:[%s254 + $0x8] sm:$0xff]
        %v257 = vld [vmem:[%s254 + $0x10] sm:$0xff]
        %v258 = vld [vmem:[%s254 + $0x18] sm:$0xff]
        %v259 = vld [vmem:[%s254 + $0x20] sm:$0xff]
        %v260 = vadd.f32 %v249, %v255
        %v261 = vadd.f32 %v250, %v256
        %v262 = vadd.f32 %v251, %v257
        %v263 = vadd.f32 %v252, %v258
        %v264 = vadd.f32 %v253, %v259
        %v265 = vmul.f32 %v260, 0.25
        %v266 = vmul.f32 %v261, 0.25
        %v267 = vmul.f32 %v262, 0.25
        %v268 = vmul.f32 %v263, 0.25
        %v269 = vmul.f32 %v264, 0.25
        %v270 = vlaneseq
        %v271 = vshrl.u32 %v270, 7
        %v272 = vadd.s32 %v271, 8
        %v273 = vadd.s32 %v271, 16
        %v274 = vadd.s32 %v271, 24
        %v275 = vadd.s32 %v271, 32
        %s276 = smul.u32 %s15, 40
        %v277 = vstv %s276
        %v278 = vadd.s32 %v271, %v277
        %v279 = vadd.s32 %v272, %v277
        %v280 = vadd.s32 %v273, %v277
        %v281 = vadd.s32 %v274, %v277
        %v282 = vadd.s32 %v275, %v277
        %vm283 = vcmp.lt.s32.totalorder %v278, 320
        %vm284 = vcmp.lt.s32.totalorder %v279, 320
        %vm285 = vcmp.lt.s32.totalorder %v280, 320
        %vm286 = vcmp.lt.s32.totalorder %v281, 320
        %vm287 = vcmp.lt.s32.totalorder %v282, 320
        %v288 = vsel %vm283, 1, 0
        %v289 = vsel %vm284, 1, 0
        %v290 = vsel %vm285, 1, 0
        %v291 = vsel %vm286, 1, 0
        %v292 = vsel %vm287, 1, 0
        %vm293 = vcmp.eq.s32.totalorder %v288, 1
        %vm294 = vcmp.eq.s32.totalorder %v289, 1
        %vm295 = vcmp.eq.s32.totalorder %v290, 1
        %vm296 = vcmp.eq.s32.totalorder %v291, 1
        %vm297 = vcmp.eq.s32.totalorder %v292, 1
        %v298 = vsel %vm293, %v265, 0.03125
        %v299 = vsel %vm294, %v266, 0.03125
        %v300 = vsel %vm295, %v267, 0.03125
        %v301 = vsel %vm296, %v268, 0.03125
        %v302 = vsel %vm297, %v269, 0.03125
        %v303 = vmul.f32 %v298, %v298
        %v304 = vmul.f32 %v299, %v299
        %v305 = vmul.f32 %v300, %v300
        %v306 = vmul.f32 %v301, %v301
        %v307 = vmul.f32 %v302, %v302
        %vm308 = vcmask 261120
        %v309 = vsel %vm308, %v303, 0.0
        %310 = vadd.xlane.f32.xlu0 %v309
        %v311 = vpop.xlane.xlu0 %310
        %v312 = vsel %vm308, %v304, 0.0
        %313 = vadd.xlane.f32.xlu0 %v312
        %v314 = vpop.xlane.xlu0 %313
        %v315 = vsel %vm308, %v305, 0.0
        %316 = vadd.xlane.f32.xlu0 %v315
        %v317 = vpop.xlane.xlu0 %316
        %v318 = vsel %vm308, %v306, 0.0
        %319 = vadd.xlane.f32.xlu0 %v318
        %v320 = vpop.xlane.xlu0 %319
        %v321 = vsel %vm308, %v307, 0.0
        %322 = vadd.xlane.f32.xlu0 %v321
        %v323 = vpop.xlane.xlu0 %322
        %v324 = vrcp.pop %v311
        %v325 = vrcp.pop %v314
        %v326 = vrcp.pop %v317
        %v327 = vrcp.pop %v320
        %v328 = vrcp.pop %v323
        %v329 = vmul.f32 %v303, %v324
        %v330 = vmul.f32 %v304, %v325
        %v331 = vmul.f32 %v305, %v326
        %v332 = vmul.f32 %v306, %v327
        %v333 = vmul.f32 %v307, %v328
        %v334 = vsub.f32 %v329, %v298
        %v335 = vsub.f32 %v330, %v299
        %v336 = vsub.f32 %v331, %v300
        %v337 = vsub.f32 %v332, %v301
        %v338 = vsub.f32 %v333, %v302
        %v339 = vmul.f32 %v334, %v334
        %v340 = vmul.f32 %v335, %v335
        %v341 = vmul.f32 %v336, %v336
        %v342 = vmul.f32 %v337, %v337
        %v343 = vmul.f32 %v338, %v338
        %v344 = vsel %vm308, %v339, 0.0
        %345 = vadd.xlane.f32.xlu0 %v344
        %v346 = vpop.xlane.xlu0 %345
        %v347 = vsel %vm308, %v340, 0.0
        %348 = vadd.xlane.f32.xlu0 %v347
        %v349 = vpop.xlane.xlu0 %348
        %v350 = vsel %vm308, %v341, 0.0
        %351 = vadd.xlane.f32.xlu0 %v350
        %v352 = vpop.xlane.xlu0 %351
        %v353 = vsel %vm308, %v342, 0.0
        %354 = vadd.xlane.f32.xlu0 %v353
        %v355 = vpop.xlane.xlu0 %354
        %v356 = vsel %vm308, %v343, 0.0
        %357 = vadd.xlane.f32.xlu0 %v356
        %v358 = vpop.xlane.xlu0 %357
        %v359 = vsel %vm283, %v346, 0.0
        %v360 = vsel %vm284, %v349, 0.0
        %v361 = vsel %vm285, %v352, 0.0
        %v362 = vsel %vm286, %v355, 0.0
        %v363 = vsel %vm287, %v358, 0.0
        %vm364 = vcmask 7168
        %v365 = vsel %vm364, %v359, 0.0
        %v366 = vsel %vm364, %v360, 0.0
        %v367 = vadd.f32 %v365, %v366
        %v368 = vsel %vm364, %v361, 0.0
        %v369 = vadd.f32 %v367, %v368
        %v370 = vsel %vm364, %v362, 0.0
        %v371 = vadd.f32 %v369, %v370
        %v372 = vsel %vm364, %v363, 0.0
        %v373 = vadd.f32 %v371, %v372
        %374 = vadd.xlane.f32.xlu0 %v373
        %v375 = vpop.xlane.xlu0 %374
        %v376 = vrot.slane %v375, 4
        %v377 = vadd.f32 %v375, %v376
        %v378 = vrot.slane %v377, 2
        %v379 = vadd.f32 %v377, %v378
        %v380 = vrot.slane %v379, 1
        %v381 = vadd.f32 %v379, %v380
        %s382 = vtos %v381
        %v383 = vstv %s382
        %384 = vst [vmem:[%s225] sm:$0x1] %v383
        %s385 = sand.u32 %s49, 1
        %s386 = scalar_lea.sflag [#allocation4], %s385
        %s387 = sand.u32 %s49, 1
        %s388 = scalar_lea.vmem [#allocation3], %s387
        // Predicated region
        $region63: #{tpu_custom_call.1} parent=57 // pred_check
          %p389 = pneg %p59
        $region64: #{tpu_custom_call.1} parent=57 // pred_check_branch
          %391 = sbr.rel (%p389) target = $region66
        $region65: #{tpu_custom_call.1} parent=57 // pred_region
          %s393 = ssub.s32 16, 16
          %394 = vsyncadd %s386, %s393
          %s395 = smul.addr %s15, 16
          %s396 = scalar_lea.hbm %s1, %s395
          %s398 = sshll.u32 %s388, 4
          %s399 = int_to_ptr.vmem [resolvable:$true] %s398
          %401 = dma.vmem_to_hbm [thread:$0]  %s399, 16, %s396, %s386
        $region66: #{tpu_custom_call.1} parent=57 // pred_fallthru
          _
      $region58: #{tpu_custom_call.1} parent=5 // pred_fallthru
        _
      %p402 = scmp.le.s32.totalorder 2, %s10
      // Predicated region
      $region67: #{tpu_custom_call.1} parent=5 // pred_check
        %p403 = pneg %p402
      $region68: #{tpu_custom_call.1} parent=5 // pred_check_branch
        %405 = sbr.rel (%p403) target = $region70
      $region69: #{tpu_custom_call.1} parent=5 // pred_region
        %s406 = ssub.s32 %s10, 2
        // Predicated region
        $region71: #{tpu_custom_call.1} parent=69 // pred_check
          %p407 = pneg %p65
        $region72: #{tpu_custom_call.1} parent=69 // pred_check_branch
          %409 = sbr.rel (%p407) target = $region74
        $region73: #{tpu_custom_call.1} parent=69 // pred_region
          %s410 = sand.u32 %s50, 1
          %s411 = scalar_lea.sflag [#allocation4], %s410
          %s412 = sand.u32 %s50, 1
          %s413 = scalar_lea.vmem [#allocation3], %s412
          %414 = dma.done %s411, 16
        $region74: #{tpu_custom_call.1} parent=69 // pred_fallthru
          _
      $region70: #{tpu_custom_call.1} parent=5 // pred_fallthru
        _
    $region6: #{tpu_custom_call.1} parent=1 // loop_footer
      %s14 = sadd.s32 1, %s10
    $region7: #{tpu_custom_call.1} parent=1 // loop_footer_branch
      %9 = sbr.rel target = $region3
    $region8: #{tpu_custom_call.1} parent=1 // loop_exit
      _
    %415 = vsyncpa [#allocation4], 1
    %s416 = scalar_lea.sflag [#allocation4], 1
    %417 = vsyncpa %s416, 1

</llo_original>
